<compile_context>
chip_gen: v7x
topology: tpu7x:2x2x1
jax: 0.10.0
libtpu: 0.0.40
codegen_flags: <defaults>
</compile_context>

<pallas_src>
import functools
import math

import jax
import jax.numpy as jnp
from jax.experimental import pallas as pl
from jax.experimental.pallas import tpu as pltpu


def _tv_kernel(x_ref, oh_ref, ow_ref, *, plane_h, block_rows, total_rows,
               mask_plane_rows, mask_tail_rows):
    """One fused block of whole (H, W) planes, flattened to rows.

    x_ref : (TB, W)   rows of the flattened (B*C*H, W) input, TB = planes_per_block*H
    oh_ref: (8, W)    row 0 = this block's per-column partial sum of vertical diff^2
    ow_ref: (8, W-1)  row 0 = this block's per-column partial sum of horizontal diff^2
    """
    x = x_ref[...].astype(jnp.float32)                      # (TB, W)
    tb, w = x.shape
    base = pl.program_id(0) * block_rows                    # global row of local row 0

    # ---- vertical (height) differences -------------------------------------
    dh = x[1:, :] - x[:-1, :]                               # (TB-1, W)
    dh2 = dh * dh
    if mask_plane_rows or mask_tail_rows:
        # Cheap (TB-1, 1) column iota; jnp.where broadcasts it across lanes.
        r = base + jax.lax.broadcasted_iota(jnp.int32, (tb - 1, 1), 0)
        keep = (r % plane_h) != (plane_h - 1)               # plane-boundary rows
        if mask_tail_rows:
            keep = jnp.logical_and(keep, r < total_rows - 1)  # padded tail rows
        dh2 = jnp.where(keep, dh2, 0.0)
    ph = jnp.sum(dh2, axis=0, keepdims=True)                # (1, W)

    # ---- horizontal (width) differences ------------------------------------
    dw = x[:, 1:] - x[:, :-1]                               # (TB, W-1)
    dw2 = dw * dw
    if mask_tail_rows:
        r = base + jax.lax.broadcasted_iota(jnp.int32, (tb, 1), 0)
        dw2 = jnp.where(r < total_rows, dw2, 0.0)
    pw = jnp.sum(dw2, axis=0, keepdims=True)                # (1, W-1)

    # ---- one dense store per output (no zero-fill + masked row stores) -----
    row_h = jax.lax.broadcasted_iota(jnp.int32, (8, w), 0)
    row_w = jax.lax.broadcasted_iota(jnp.int32, (8, w - 1), 0)
    oh_ref[...] = jnp.where(row_h == 0, ph, 0.0)
    ow_ref[...] = jnp.where(row_w == 0, pw, 0.0)


def _pick_vmem_limit():
    """Per-generation VMEM limit: 64 MiB on v5e/v6e (128 MiB physical),
    ~48 MiB on v7x (64 MiB physical)."""
    try:
        cap = int(pltpu.get_tpu_info().vmem_capacity_bytes)
    except Exception:
        cap = 64 * 1024 * 1024
    return int(min(64 * 1024 * 1024, (cap * 3) // 4))


def _choose_planes_per_block(num_planes, plane_h, plane_w, block_budget_bytes):
    """Planes fused per grid block.

    Constraints:
      * block rows (p * H) must be a multiple of 8 (BlockSpec sublane rule),
        unless a single block covers the whole flattened array;
      * the f32 footprint of one block stays under `block_budget_bytes`;
      * keep >= 2 blocks when possible so the "parallel" grid axis can feed
        both TensorCores on v7x.
    The grid uses cdiv + in-kernel tail masking, so p need not divide B*C.
    """
    bytes_per_plane = max(1, plane_h * plane_w * 4)          # in-kernel f32
    gran = 8 // math.gcd(plane_h, 8)                         # p granularity for 8-alignment

    if num_planes <= gran:
        # Single block == full array: always a legal block shape.
        return num_planes

    p_budget = max(1, block_budget_bytes // bytes_per_plane)
    # TODO(synk): tile H (with a 1-row halo) / W when even the minimal block
    # exceeds the VMEM budget (e.g. 4Kx4K f32 planes on v7x).
    p = max(gran, (p_budget // gran) * gran)

    # Prefer >= 2 blocks (v7x megacore) when the granularity allows it.
    if p >= num_planes:
        half = -(-num_planes // 2)                           # ceil(num_planes / 2)
        p = max(gran, ((half + gran - 1) // gran) * gran)
    return min(p, num_planes)


def tv_loss(x):
    """TVLoss.forward equivalent.  x: (B, C, H, W) -> scalar float32."""
    B, C, H, W = x.shape
    num_planes = B * C
    rows = num_planes * H

    vmem_limit = _pick_vmem_limit()
    block_budget = vmem_limit // 12   # 2x double-buffered input + ~4 f32 temps + slack
    planes_per_block = _choose_planes_per_block(num_planes, H, W, block_budget)
    tb = planes_per_block * H
    num_blocks = -(-num_planes // planes_per_block)          # ceil
    has_tail = (num_planes % planes_per_block) != 0

    x2 = x.reshape(rows, W)            # contiguous view; no data movement

    kernel = functools.partial(
        _tv_kernel,
        plane_h=H,
        block_rows=tb,
        total_rows=rows,
        mask_plane_rows=(planes_per_block > 1) or has_tail,
        mask_tail_rows=has_tail,
    )

    out_bytes = num_blocks * 8 * (2 * W - 1) * 4
    cost = pl.CostEstimate(
        flops=6 * x.size,
        transcendentals=0,
        bytes_accessed=x.size * x.dtype.itemsize + out_bytes,
    )

    oh, ow = pl.pallas_call(
        kernel,
        out_shape=(
            jax.ShapeDtypeStruct((num_blocks * 8, W), jnp.float32),
            jax.ShapeDtypeStruct((num_blocks * 8, W - 1), jnp.float32),
        ),
        grid=(num_blocks,),
        in_specs=[pl.BlockSpec((tb, W), lambda i: (i, 0))],
        out_specs=(
            pl.BlockSpec((8, W), lambda i: (i, 0)),
            pl.BlockSpec((8, W - 1), lambda i: (i, 0)),
        ),
        compiler_params=pltpu.CompilerParams(
            dimension_semantics=("parallel",),
            vmem_limit_bytes=vmem_limit,
        ),
        cost_estimate=cost,
    )(x2)

    # Scalar glue: final cross-lane reduce + normalization (matches PyTorch).
    count_h = C * (H - 1) * W   # _tensor_size(x[:, :, 1:, :])
    count_w = C * H * (W - 1)   # _tensor_size(x[:, :, :, 1:])
    h_tv = jnp.sum(oh)
    w_tv = jnp.sum(ow)
    return 2.0 * (h_tv / count_h + w_tv / count_w) / B


def _tv_loss_ref(x):
    """Pure-JAX reference for validation."""
    B, C, H, W = x.shape
    xf = x.astype(jnp.float32)
    count_h = C * (H - 1) * W
    count_w = C * H * (W - 1)
    h_tv = jnp.sum(jnp.square(xf[:, :, 1:, :] - xf[:, :, : H - 1, :]))
    w_tv = jnp.sum(jnp.square(xf[:, :, :, 1:] - xf[:, :, :, : W - 1]))
    return 2.0 * (h_tv / count_h + w_tv / count_w) / B


if __name__ == "__main__":
    key = jax.random.PRNGKey(0)

    # Primary case (multi-plane blocks, >= 2 parallel grid blocks).
    x = jax.random.normal(key, (2, 4, 16, 16), dtype=jnp.float32)
    out = jax.block_until_ready(jax.jit(tv_loss)(x))
    ref = jax.block_until_ready(_tv_loss_ref(x))
    assert jnp.allclose(out, ref, rtol=1e-5, atol=1e-5), (out, ref)

    # Ragged case: B*C not divisible by planes_per_block -> exercises the
    # cdiv grid + tail-masking path.
    x2 = jax.random.normal(jax.random.PRNGKey(1), (3, 1, 16, 16), dtype=jnp.float32)
    out2 = jax.block_until_ready(jax.jit(tv_loss)(x2))
    ref2 = jax.block_until_ready(_tv_loss_ref(x2))
    assert jnp.allclose(out2, ref2, rtol=1e-5, atol=1e-5), (out2, ref2)

    print("KERNEL_OK")
</pallas_src>

<mosaic_0001>
module attributes {stable_mosaic.version = 11 : i64} {
  func.func @_tv_kernel(%arg0: i32, %arg1: memref<64x16xf32, #tpu.memory_space<vmem>>, %arg2: memref<8x16xf32, #tpu.memory_space<vmem>>, %arg3: memref<8x15xf32, #tpu.memory_space<vmem>>) attributes {dimension_semantics = [#tpu.dimension_semantics<parallel>], iteration_bounds = array<i64: 2>, scalar_prefetch = 0 : i64, scratch_operands = 0 : i64, tpu.core_type = #tpu.core_type<tc>, window_params = [{transform_indices = @transform_0, window_bounds = array<i64: 64, 16>}, {transform_indices = @transform_1, window_bounds = array<i64: 8, 16>}, {transform_indices = @transform_2, window_bounds = array<i64: 8, 15>}]} {
    %c0 = arith.constant 0 : index
    %c0_0 = arith.constant 0 : index
    %0 = vector.load %arg1[%c0, %c0_0] : memref<64x16xf32, #tpu.memory_space<vmem>>, vector<64x16xf32>
    %c64_i32 = arith.constant 64 : i32
    %1 = arith.muli %arg0, %c64_i32 : i32
    %2 = vector.extract_strided_slice %0 {offsets = [1, 0], sizes = [63, 16], strides = [1, 1]} : vector<64x16xf32> to vector<63x16xf32>
    %3 = vector.extract_strided_slice %0 {offsets = [0, 0], sizes = [63, 16], strides = [1, 1]} : vector<64x16xf32> to vector<63x16xf32>
    %4 = arith.subf %2, %3 : vector<63x16xf32>
    %5 = arith.mulf %4, %4 : vector<63x16xf32>
    %6 = tpu.iota {dimensions = array<i32: 0>} : vector<63x1xi32>
    %7 = vector.broadcast %1 : i32 to vector<63x1xi32>
    %8 = arith.addi %7, %6 : vector<63x1xi32>
    %c16_i32 = arith.constant 16 : i32
    %c0_i32 = arith.constant 0 : i32
    %9 = arith.cmpi eq, %c16_i32, %c0_i32 : i32
    %c1_i32 = arith.constant 1 : i32
    %10 = arith.select %9, %c1_i32, %c16_i32 : i32
    %11 = vector.broadcast %10 : i32 to vector<63x1xi32>
    %12 = arith.remsi %8, %11 : vector<63x1xi32>
    %c0_i32_1 = arith.constant 0 : i32
    %13 = vector.broadcast %c0_i32_1 : i32 to vector<63x1xi32>
    %14 = arith.cmpi ne, %12, %13 : vector<63x1xi32>
    %c0_i32_2 = arith.constant 0 : i32
    %15 = vector.broadcast %c0_i32_2 : i32 to vector<63x1xi32>
    %16 = arith.cmpi slt, %12, %15 : vector<63x1xi32>
    %c0_i32_3 = arith.constant 0 : i32
    %17 = arith.cmpi slt, %10, %c0_i32_3 : i32
    %18 = vector.broadcast %17 : i1 to vector<63x1xi1>
    %19 = vector.broadcast %18 : vector<63x1xi1> to vector<63x1xi1>
    %20 = arith.xori %16, %19 : vector<63x1xi1>
    %21 = arith.andi %20, %14 : vector<63x1xi1>
    %22 = vector.broadcast %10 : i32 to vector<63x1xi32>
    %23 = arith.addi %12, %22 : vector<63x1xi32>
    %24 = arith.select %21, %23, %12 : vector<63x1xi1>, vector<63x1xi32>
    %c15_i32 = arith.constant 15 : i32
    %25 = vector.broadcast %c15_i32 : i32 to vector<63x1xi32>
    %26 = arith.cmpi ne, %24, %25 : vector<63x1xi32>
    %cst = arith.constant 0.000000e+00 : f32
    %27 = vector.shape_cast %26 : vector<63x1xi1> to vector<63x1xi1>
    %28 = vector.broadcast %27 : vector<63x1xi1> to vector<63x16xi1>
    %29 = vector.broadcast %cst : f32 to vector<63x16xf32>
    %30 = arith.select %28, %5, %29 : vector<63x16xi1>, vector<63x16xf32>
    %cst_4 = arith.constant dense<0.000000e+00> : vector<16xf32>
    %31 = vector.multi_reduction <add>, %30, %cst_4 [0] : vector<63x16xf32> to vector<16xf32>
    %32 = vector.shape_cast %31 : vector<16xf32> to vector<1x16xf32>
    %33 = vector.extract_strided_slice %0 {offsets = [0, 1], sizes = [64, 15], strides = [1, 1]} : vector<64x16xf32> to vector<64x15xf32>
    %34 = vector.extract_strided_slice %0 {offsets = [0, 0], sizes = [64, 15], strides = [1, 1]} : vector<64x16xf32> to vector<64x15xf32>
    %35 = arith.subf %33, %34 : vector<64x15xf32>
    %36 = arith.mulf %35, %35 : vector<64x15xf32>
    %cst_5 = arith.constant dense<0.000000e+00> : vector<15xf32>
    %37 = vector.multi_reduction <add>, %36, %cst_5 [0] : vector<64x15xf32> to vector<15xf32>
    %38 = vector.shape_cast %37 : vector<15xf32> to vector<1x15xf32>
    %39 = tpu.iota {dimensions = array<i32: 0>} : vector<8x16xi32>
    %40 = tpu.iota {dimensions = array<i32: 0>} : vector<8x15xi32>
    %c0_i32_6 = arith.constant 0 : i32
    %41 = vector.broadcast %c0_i32_6 : i32 to vector<8x16xi32>
    %42 = arith.cmpi eq, %39, %41 : vector<8x16xi32>
    %cst_7 = arith.constant 0.000000e+00 : f32
    %43 = vector.shape_cast %32 : vector<1x16xf32> to vector<1x16xf32>
    %44 = vector.broadcast %43 : vector<1x16xf32> to vector<8x16xf32>
    %45 = vector.broadcast %cst_7 : f32 to vector<8x16xf32>
    %46 = arith.select %42, %44, %45 : vector<8x16xi1>, vector<8x16xf32>
    %c0_8 = arith.constant 0 : index
    %c0_9 = arith.constant 0 : index
    %47 = vector.load %arg2[%c0_8, %c0_9] : memref<8x16xf32, #tpu.memory_space<vmem>>, vector<8x16xf32>
    tpu.vector_store %arg2[%c0_8, %c0_9], %46 {strides = array<i32>} : memref<8x16xf32, #tpu.memory_space<vmem>>, vector<8x16xf32>,
    %c0_i32_10 = arith.constant 0 : i32
    %48 = vector.broadcast %c0_i32_10 : i32 to vector<8x15xi32>
    %49 = arith.cmpi eq, %40, %48 : vector<8x15xi32>
    %cst_11 = arith.constant 0.000000e+00 : f32
    %50 = vector.shape_cast %38 : vector<1x15xf32> to vector<1x15xf32>
    %51 = vector.broadcast %50 : vector<1x15xf32> to vector<8x15xf32>
    %52 = vector.broadcast %cst_11 : f32 to vector<8x15xf32>
    %53 = arith.select %49, %51, %52 : vector<8x15xi1>, vector<8x15xf32>
    %c0_12 = arith.constant 0 : index
    %c0_13 = arith.constant 0 : index
    %54 = vector.load %arg3[%c0_12, %c0_13] : memref<8x15xf32, #tpu.memory_space<vmem>>, vector<8x15xf32>
    tpu.vector_store %arg3[%c0_12, %c0_13], %53 {strides = array<i32>} : memref<8x15xf32, #tpu.memory_space<vmem>>, vector<8x15xf32>,
    return
  }
  func.func @transform_0(%arg0: i32) -> (i32, i32) {
    %c0_i32 = arith.constant 0 : i32
    %c0_i32_0 = arith.constant 0 : i32
    return %arg0, %c0_i32 : i32, i32
  }
  func.func @transform_1(%arg0: i32) -> (i32, i32) {
    %c0_i32 = arith.constant 0 : i32
    %c0_i32_0 = arith.constant 0 : i32
    return %arg0, %c0_i32 : i32, i32
  }
  func.func @transform_2(%arg0: i32) -> (i32, i32) {
    %c0_i32 = arith.constant 0 : i32
    %c0_i32_0 = arith.constant 0 : i32
    return %arg0, %c0_i32 : i32, i32
  }
}

</mosaic_0001>

<llo_original>
// kernel: tv_loss.1
$region0: #{tv_loss.1}
  #allocation0 [shape = 'u32[]', space=smem, size = 0x4, offset = 0x4, fixed_abs, tag = 'smem constant byte address 0x4 - core index']
  #allocation1 [shape = 'u32[144,128]{1,0:T(1,128)}', space=vmem, size = 0x12000, scoped, tag = 'internal scratch']
  %s0 = inlined_call_operand.hbm [shape: f32[128,16], index: 0, kind: input, shape index: {}]
  %s1 = inlined_call_operand.vmem [shape: f32[16,16], index: 1, kind: output, shape index: {0}]
  %s2 = inlined_call_operand.vmem [shape: f32[16,15], index: 2, kind: output, shape index: {1}]
  %3 = xla_tuple %s1, %s2
  %s4 = sld [smem:[#allocation0]]
  $region49: #{tv_loss.1} parent=0
    _
  %s6 = ssub.s32 1, %s4
  %s7 = scalar_select 0, %s6, %s4
  $region1: #{tv_loss.1} parent=0
    #allocation2 [shape = 'u8[65536]{0}', space=vmem, size = 0x10000, scoped, tag = 'input window, operand 0']
    #allocation3 [shape = 's32[2]{0}', space=sflag, size = 0x8, scoped, tag = 'scoped memory for tv_loss.1']
    %8 = vsyncpa [#allocation3], 0
    %s9 = scalar_lea.sflag [#allocation3], 1
    %10 = vsyncpa %s9, 0
    loop: start=0, step=1, limit=4
    $region2: #{tv_loss.1} parent=1 // loop_pre_header
      _
    $region3: #{tv_loss.1} parent=1 // loop_header
      %s12 = sphi 0, %s16
      %p13 = scmp.ge.s32.totalorder %s12, 4
      %s22 = sphi 0, %s24
      %s25 = sphi 0, %s22
      %s26 = sphi 0, %s25
      %s42 = sphi 0, %s26
      %s48 = sphi 0, %s50
      %s51 = sphi 0, %s48
      %s52 = sphi 0, %s51
      %s68 = sphi 0, %s52
      %s74 = sphi 0, %s76
      %s77 = sphi 0, %s74
      %s78 = sphi 0, %s77
      %s94 = sphi 0, %s78
    $region4: #{tv_loss.1} parent=1 // loop_header_branch
      %15 = sbr.rel (%p13) target = $region8
    $region5: #{tv_loss.1} parent=1 // loop_body
      %s17 = ssub.s32 %s12, 1
      %s18 = ssub.s32 %s12, 2
      %s19 = sadd.s32 %s12, 1
      %s20 = ssub.s32 %s12, %s19
      %p21 = scmp.eq.s32.totalorder %s20, 0
      %s23 = sadd.s32 %s22, 1
      %s24 = scalar_select %p21, %s22, %s23
      %p27 = pneg %p21
      %p28 = scmp.eq.s32.totalorder %s12, 1
      %p29 = por %p27, %p28
      %p30 = scmp.ne.s32.totalorder %s22, %s25
      %p31 = scmp.eq.s32.totalorder %s12, 0
      %p32 = por %p30, %p31
      %p33 = scmp.ne.s32.totalorder %s22, %s25
      %p34 = scmp.eq.s32.totalorder %s17, 1
      %p35 = por %p33, %p34
      %p36 = scmp.ne.s32.totalorder %s25, %s26
      %p37 = scmp.eq.s32.totalorder %s17, 0
      %p38 = por %p36, %p37
      %p39 = scmp.ne.s32.totalorder %s25, %s26
      %p40 = scmp.eq.s32.totalorder %s18, 1
      %p41 = por %p39, %p40
      %p43 = scmp.ne.s32.totalorder %s26, %s42
      %p44 = scmp.eq.s32.totalorder %s18, 0
      %p45 = por %p43, %p44
      %s46 = ssub.s32 %s12, %s19
      %p47 = scmp.eq.s32.totalorder %s46, 0
      %s49 = sadd.s32 %s48, 1
      %s50 = scalar_select %p47, %s48, %s49
      %p53 = pneg %p47
      %p54 = scmp.eq.s32.totalorder %s12, 1
      %p55 = por %p53, %p54
      %p56 = scmp.ne.s32.totalorder %s48, %s51
      %p57 = scmp.eq.s32.totalorder %s12, 0
      %p58 = por %p56, %p57
      %p59 = scmp.ne.s32.totalorder %s48, %s51
      %p60 = scmp.eq.s32.totalorder %s17, 1
      %p61 = por %p59, %p60
      %p62 = scmp.ne.s32.totalorder %s51, %s52
      %p63 = scmp.eq.s32.totalorder %s17, 0
      %p64 = por %p62, %p63
      %p65 = scmp.ne.s32.totalorder %s51, %s52
      %p66 = scmp.eq.s32.totalorder %s18, 1
      %p67 = por %p65, %p66
      %p69 = scmp.ne.s32.totalorder %s52, %s68
      %p70 = scmp.eq.s32.totalorder %s18, 0
      %p71 = por %p69, %p70
      %s72 = ssub.s32 %s12, %s19
      %p73 = scmp.eq.s32.totalorder %s72, 0
      %s75 = sadd.s32 %s74, 1
      %s76 = scalar_select %p73, %s74, %s75
      %p79 = pneg %p73
      %p80 = scmp.eq.s32.totalorder %s12, 1
      %p81 = por %p79, %p80
      %p82 = scmp.ne.s32.totalorder %s74, %s77
      %p83 = scmp.eq.s32.totalorder %s12, 0
      %p84 = por %p82, %p83
      %p85 = scmp.ne.s32.totalorder %s74, %s77
      %p86 = scmp.eq.s32.totalorder %s17, 1
      %p87 = por %p85, %p86
      %p88 = scmp.ne.s32.totalorder %s77, %s78
      %p89 = scmp.eq.s32.totalorder %s17, 0
      %p90 = por %p88, %p89
      %p91 = scmp.ne.s32.totalorder %s77, %s78
      %p92 = scmp.eq.s32.totalorder %s18, 1
      %p93 = por %p91, %p92
      %p95 = scmp.ne.s32.totalorder %s78, %s94
      %p96 = scmp.eq.s32.totalorder %s18, 0
      %p97 = por %p95, %p96
      %p98 = scmp.le.s32.totalorder 1, %s12
      %p99 = scmp.lt.s32.totalorder %s12, 3
      %p100 = pnand %p98, %p99
      %p101 = pneg %p100
      // Predicated region
      $region9: #{tv_loss.1} parent=5 // pred_check
        _
      $region10: #{tv_loss.1} parent=5 // pred_check_branch
        %103 = sbr.rel (%p100) target = $region12
      $region11: #{tv_loss.1} parent=5 // pred_region
        %s104 = ssub.s32 %s12, 1
      $region12: #{tv_loss.1} parent=5 // pred_fallthru
        _
      %p105 = scmp.lt.s32.totalorder %s12, 2
      // Predicated region
      $region13: #{tv_loss.1} parent=5 // pred_check
        %p106 = pneg %p105
      $region14: #{tv_loss.1} parent=5 // pred_check_branch
        %108 = sbr.rel (%p106) target = $region16
      $region15: #{tv_loss.1} parent=5 // pred_region
        // Predicated region
        $region17: #{tv_loss.1} parent=15 // pred_check
          %p109 = pneg %p32
        $region18: #{tv_loss.1} parent=15 // pred_check_branch
          %111 = sbr.rel (%p109) target = $region20
        $region19: #{tv_loss.1} parent=15 // pred_region
          %s112 = sand.u32 %s22, 1
          %s113 = scalar_lea.sflag [#allocation3], %s112
          %s114 = sand.u32 %s22, 1
          %s115 = smul.addr %s114, 64
          %s116 = scalar_lea.vmem [#allocation2], %s115
          %s117 = smul.u32 8, %s12
          %s119 = ssub.s32 1024, 1024
          %120 = vsyncadd %s113, %s119
          %s121 = smul.addr %s117, 128
          %s122 = scalar_lea.hbm %s0, %s121
          %s123 = sshll.u32 %s116, 4
          %s124 = int_to_ptr.vmem [resolvable:$true] %s123
          %129 = dma.hbm_to_vmem [thread:$0]  %s122, 1024, %s124, %s113, 128, 128, 8
        $region20: #{tv_loss.1} parent=15 // pred_fallthru
          _
      $region16: #{tv_loss.1} parent=5 // pred_fallthru
        _
      %p130 = scmp.le.s32.totalorder 1, %s12
      %p131 = scmp.lt.s32.totalorder %s12, 3
      %p132 = pnand %p130, %p131
      %p133 = pneg %p132
      // Predicated region
      $region21: #{tv_loss.1} parent=5 // pred_check
        _
      $region22: #{tv_loss.1} parent=5 // pred_check_branch
        %135 = sbr.rel (%p132) target = $region24
      $region23: #{tv_loss.1} parent=5 // pred_region
        %s136 = ssub.s32 %s12, 1
        %s137 = sand.u32 %s25, 1
        %s138 = scalar_lea.sflag [#allocation3], %s137
        %s139 = sand.u32 %s25, 1
        %s140 = smul.addr %s139, 64
        %s141 = scalar_lea.vmem [#allocation2], %s140
        // Predicated region
        $region25: #{tv_loss.1} parent=23 // pred_check
          %p142 = pneg %p38
        $region26: #{tv_loss.1} parent=23 // pred_check_branch
          %144 = sbr.rel (%p142) target = $region28
        $region27: #{tv_loss.1} parent=23 // pred_region
          %145 = dma.done %s138, 1024
        $region28: #{tv_loss.1} parent=23 // pred_fallthru
          _
        %s146 = sand.u32 %s25, 1
        %s147 = scalar_lea.sflag [#allocation3], %s146
        %s148 = sand.u32 %s25, 1
        %s149 = smul.addr %s148, 64
        %s150 = scalar_lea.vmem [#allocation2], %s149
        %p151 = pneg %p38
        %p152 = pneg %p35
        %p153 = pneg %p64
        %p154 = pneg %p61
        %p155 = scmp.lt.s32.totalorder %s17, 1
        %s156 = scalar_select %p155, %s17, 1
        %s157 = smul.addr %s156, 8
        %s158 = scalar_lea.vmem %s1, %s157
        %p159 = pneg %p90
        %p160 = pneg %p87
        %p161 = scmp.lt.s32.totalorder %s17, 1
        %s162 = scalar_select %p161, %s17, 1
        %s163 = smul.addr %s162, 8
        %s164 = scalar_lea.vmem %s2, %s163
        %s165 = smul.u32 8, %s17
        %p166 = scmp.lt.s32.totalorder %s17, 1
        %s167 = scalar_select %p166, %s17, 1
        %s168 = smul.addr %s167, 8
        %s169 = scalar_lea.vmem %s1, %s168
        %p170 = scmp.lt.s32.totalorder %s17, 1
        %s171 = scalar_select %p170, %s17, 1
        %s172 = smul.addr %s171, 8
        %s173 = scalar_lea.vmem %s2, %s172
        %v174 = vld [vmem:[%s141] sm:$0xff]
        %v175 = vld [vmem:[%s141 + $0x8] sm:$0xff]
        %v176 = vld [vmem:[%s141 + $0x10] sm:$0xff]
        %v177 = vld [vmem:[%s141 + $0x18] sm:$0xff]
        %v178 = vld [vmem:[%s141 + $0x20] sm:$0xff]
        %v179 = vld [vmem:[%s141 + $0x28] sm:$0xff]
        %v180 = vld [vmem:[%s141 + $0x30] sm:$0xff]
        %v181 = vld [vmem:[%s141 + $0x38] sm:$0xff]
        %s182 = smul.u32 %s17, 64
        %vm191 = vcmask 1040384
        %v192 = vrot.slane %v174, 7
        %v193 = vrot.slane %v175, 7
        %v194 = vsel %vm191, %v192, %v193
        %v195 = vrot.slane %v176, 7
        %v196 = vsel %vm191, %v193, %v195
        %v197 = vrot.slane %v177, 7
        %v198 = vsel %vm191, %v195, %v197
        %v199 = vrot.slane %v178, 7
        %v200 = vsel %vm191, %v197, %v199
        %v201 = vrot.slane %v179, 7
        %v202 = vsel %vm191, %v199, %v201
        %v203 = vrot.slane %v180, 7
        %v204 = vsel %vm191, %v201, %v203
        %v205 = vrot.slane %v181, 7
        %v206 = vsel %vm191, %v203, %v205
        %v215 = vsub.f32 %v174, %v192
        %v216 = vsub.f32 %v175, %v194
        %v217 = vsub.f32 %v176, %v196
        %v218 = vsub.f32 %v177, %v198
        %v219 = vsub.f32 %v178, %v200
        %v220 = vsub.f32 %v179, %v202
        %v221 = vsub.f32 %v180, %v204
        %v222 = vsub.f32 %v181, %v206
        %v223 = vmul.f32 %v215, %v215
        %v224 = vmul.f32 %v216, %v216
        %v225 = vmul.f32 %v217, %v217
        %v226 = vmul.f32 %v218, %v218
        %v227 = vmul.f32 %v219, %v219
        %v228 = vmul.f32 %v220, %v220
        %v229 = vmul.f32 %v221, %v221
        %v230 = vmul.f32 %v222, %v222
        %v231 = vlaneseq
        %v232 = vshrl.u32 %v231, 7
        %v233 = vadd.s32 %v232, 8
        %v234 = vadd.s32 %v232, 16
        %v235 = vadd.s32 %v232, 24
        %v236 = vadd.s32 %v232, 32
        %v237 = vadd.s32 %v232, 40
        %v238 = vadd.s32 %v232, 48
        %v239 = vadd.s32 %v232, 56
        %v240 = vstv %s182
        %v241 = vadd.s32 %v240, %v232
        %v242 = vadd.s32 %v240, %v233
        %v243 = vadd.s32 %v240, %v234
        %v244 = vadd.s32 %v240, %v235
        %v245 = vadd.s32 %v240, %v236
        %v246 = vadd.s32 %v240, %v237
        %v247 = vadd.s32 %v240, %v238
        %v248 = vadd.s32 %v240, %v239
        %vm249 = vcmp.lt.s32.totalorder %v241, 0
        %v250 = vsub.s32 0, %v241
        %v251 = vsel %vm249, %v250, %v241
        %v252 = vshrl.u32 %v251, 4
        %v253 = vand.u32 %v251, 15
        %v254 = vsub.s32 0, %v253
        %v255 = vsel %vm249, %v254, %v253
        %vm256 = vcmp.lt.s32.totalorder %v242, 0
        %v257 = vsub.s32 0, %v242
        %v258 = vsel %vm256, %v257, %v242
        %v259 = vshrl.u32 %v258, 4
        %v260 = vand.u32 %v258, 15
        %v261 = vsub.s32 0, %v260
        %v262 = vsel %vm256, %v261, %v260
        %vm263 = vcmp.lt.s32.totalorder %v243, 0
        %v264 = vsub.s32 0, %v243
        %v265 = vsel %vm263, %v264, %v243
        %v266 = vshrl.u32 %v265, 4
        %v267 = vand.u32 %v265, 15
        %v268 = vsub.s32 0, %v267
        %v269 = vsel %vm263, %v268, %v267
        %vm270 = vcmp.lt.s32.totalorder %v244, 0
        %v271 = vsub.s32 0, %v244
        %v272 = vsel %vm270, %v271, %v244
        %v273 = vshrl.u32 %v272, 4
        %v274 = vand.u32 %v272, 15
        %v275 = vsub.s32 0, %v274
        %v276 = vsel %vm270, %v275, %v274
        %vm277 = vcmp.lt.s32.totalorder %v245, 0
        %v278 = vsub.s32 0, %v245
        %v279 = vsel %vm277, %v278, %v245
        %v280 = vshrl.u32 %v279, 4
        %v281 = vand.u32 %v279, 15
        %v282 = vsub.s32 0, %v281
        %v283 = vsel %vm277, %v282, %v281
        %vm284 = vcmp.lt.s32.totalorder %v246, 0
        %v285 = vsub.s32 0, %v246
        %v286 = vsel %vm284, %v285, %v246
        %v287 = vshrl.u32 %v286, 4
        %v288 = vand.u32 %v286, 15
        %v289 = vsub.s32 0, %v288
        %v290 = vsel %vm284, %v289, %v288
        %vm291 = vcmp.lt.s32.totalorder %v247, 0
        %v292 = vsub.s32 0, %v247
        %v293 = vsel %vm291, %v292, %v247
        %v294 = vshrl.u32 %v293, 4
        %v295 = vand.u32 %v293, 15
        %v296 = vsub.s32 0, %v295
        %v297 = vsel %vm291, %v296, %v295
        %vm298 = vcmp.lt.s32.totalorder %v248, 0
        %v299 = vsub.s32 0, %v248
        %v300 = vsel %vm298, %v299, %v248
        %v301 = vshrl.u32 %v300, 4
        %v302 = vand.u32 %v300, 15
        %v303 = vsub.s32 0, %v302
        %v304 = vsel %vm298, %v303, %v302
        %vm305 = vcmp.ne.s32.totalorder %v255, 0
        %vm306 = vcmp.ne.s32.totalorder %v262, 0
        %vm307 = vcmp.ne.s32.totalorder %v269, 0
        %vm308 = vcmp.ne.s32.totalorder %v276, 0
        %vm309 = vcmp.ne.s32.totalorder %v283, 0
        %vm310 = vcmp.ne.s32.totalorder %v290, 0
        %vm311 = vcmp.ne.s32.totalorder %v297, 0
        %vm312 = vcmp.ne.s32.totalorder %v304, 0
        %vm313 = vcmp.lt.s32.totalorder %v255, 0
        %vm314 = vcmp.lt.s32.totalorder %v262, 0
        %vm315 = vcmp.lt.s32.totalorder %v269, 0
        %vm316 = vcmp.lt.s32.totalorder %v276, 0
        %vm317 = vcmp.lt.s32.totalorder %v283, 0
        %vm318 = vcmp.lt.s32.totalorder %v290, 0
        %vm319 = vcmp.lt.s32.totalorder %v297, 0
        %vm320 = vcmp.lt.s32.totalorder %v304, 0
        %vm321 = vmand %vm313, %vm305
        %vm322 = vmand %vm314, %vm306
        %vm323 = vmand %vm315, %vm307
        %vm324 = vmand %vm316, %vm308
        %vm325 = vmand %vm317, %vm309
        %vm326 = vmand %vm318, %vm310
        %vm327 = vmand %vm319, %vm311
        %vm328 = vmand %vm320, %vm312
        %v329 = vadd.s32 %v255, 16
        %v330 = vadd.s32 %v262, 16
        %v331 = vadd.s32 %v269, 16
        %v332 = vadd.s32 %v276, 16
        %v333 = vadd.s32 %v283, 16
        %v334 = vadd.s32 %v290, 16
        %v335 = vadd.s32 %v297, 16
        %v336 = vadd.s32 %v304, 16
        %v337 = vsel %vm321, %v329, %v255
        %v338 = vsel %vm322, %v330, %v262
        %v339 = vsel %vm323, %v331, %v269
        %v340 = vsel %vm324, %v332, %v276
        %v341 = vsel %vm325, %v333, %v283
        %v342 = vsel %vm326, %v334, %v290
        %v343 = vsel %vm327, %v335, %v297
        %v344 = vsel %vm328, %v336, %v304
        %vm345 = vcmp.ne.s32.totalorder %v337, 15
        %vm346 = vcmp.ne.s32.totalorder %v338, 15
        %vm347 = vcmp.ne.s32.totalorder %v339, 15
        %vm348 = vcmp.ne.s32.totalorder %v340, 15
        %vm349 = vcmp.ne.s32.totalorder %v341, 15
        %vm350 = vcmp.ne.s32.totalorder %v342, 15
        %vm351 = vcmp.ne.s32.totalorder %v343, 15
        %vm352 = vcmp.ne.s32.totalorder %v344, 15
        %v353 = vsel %vm345, 1, 0
        %v354 = vsel %vm346, 1, 0
        %v355 = vsel %vm347, 1, 0
        %v356 = vsel %vm348, 1, 0
        %v357 = vsel %vm349, 1, 0
        %v358 = vsel %vm350, 1, 0
        %v359 = vsel %vm351, 1, 0
        %v360 = vsel %vm352, 1, 0
        %vm361 = vcmp.eq.s32.totalorder %v353, 1
        %vm362 = vcmp.eq.s32.totalorder %v354, 1
        %vm363 = vcmp.eq.s32.totalorder %v355, 1
        %vm364 = vcmp.eq.s32.totalorder %v356, 1
        %vm365 = vcmp.eq.s32.totalorder %v357, 1
        %vm366 = vcmp.eq.s32.totalorder %v358, 1
        %vm367 = vcmp.eq.s32.totalorder %v359, 1
        %vm368 = vcmp.eq.s32.totalorder %v360, 1
        %vm377 = vcmask 1046528
        %v378 = vrot.slane %v223, 1
        %v379 = vrot.slane %v224, 1
        %v380 = vsel %vm377, %v378, %v379
        %v381 = vrot.slane %v225, 1
        %v382 = vsel %vm377, %v379, %v381
        %v383 = vrot.slane %v226, 1
        %v384 = vsel %vm377, %v381, %v383
        %v385 = vrot.slane %v227, 1
        %v386 = vsel %vm377, %v383, %v385
        %v387 = vrot.slane %v228, 1
        %v388 = vsel %vm377, %v385, %v387
        %v389 = vrot.slane %v229, 1
        %v390 = vsel %vm377, %v387, %v389
        %v391 = vrot.slane %v230, 1
        %v392 = vsel %vm377, %v389, %v391
        %v401 = vsel %vm361, %v380, 0.0
        %v402 = vsel %vm362, %v382, 0.0
        %v403 = vsel %vm363, %v384, 0.0
        %v404 = vsel %vm364, %v386, 0.0
        %v405 = vsel %vm365, %v388, 0.0
        %v406 = vsel %vm366, %v390, 0.0
        %v407 = vsel %vm367, %v392, 0.0
        %v408 = vsel %vm368, %v391, 0.0
        %vm409 = vcmask 130048
        %v410 = vsel %vm409, %v401, 0.0
        %v411 = vsel %vm409, %v402, 0.0
        %v412 = vadd.f32 %v410, %v411
        %v413 = vsel %vm409, %v403, 0.0
        %v414 = vadd.f32 %v412, %v413
        %v415 = vsel %vm409, %v404, 0.0
        %v416 = vadd.f32 %v414, %v415
        %v417 = vsel %vm409, %v405, 0.0
        %v418 = vadd.f32 %v416, %v417
        %v419 = vsel %vm409, %v406, 0.0
        %v420 = vadd.f32 %v418, %v419
        %v421 = vsel %vm409, %v407, 0.0
        %v422 = vadd.f32 %v420, %v421
        %vm423 = vcmask 129024
        %v424 = vsel %vm423, %v408, 0.0
        %v425 = vadd.f32 %v422, %v424
        %v426 = vrot.slane %v425, 4
        %v427 = vadd.f32 %v425, %v426
        %v428 = vrot.slane %v427, 2
        %v429 = vadd.f32 %v427, %v428
        %v430 = vrot.slane %v429, 1
        %v431 = vadd.f32 %v429, %v430
        %432 = vrot.lane.b32.xlu0 %v174, 1
        %v433 = vpop.permute.xlu0 %432
        %434 = vrot.lane.b32.xlu0 %v175, 1
        %v435 = vpop.permute.xlu0 %434
        %436 = vrot.lane.b32.xlu0 %v176, 1
        %v437 = vpop.permute.xlu0 %436
        %438 = vrot.lane.b32.xlu0 %v177, 1
        %v439 = vpop.permute.xlu0 %438
        %440 = vrot.lane.b32.xlu0 %v178, 1
        %v441 = vpop.permute.xlu0 %440
        %442 = vrot.lane.b32.xlu0 %v179, 1
        %v443 = vpop.permute.xlu0 %442
        %444 = vrot.lane.b32.xlu0 %v180, 1
        %v445 = vpop.permute.xlu0 %444
        %446 = vrot.lane.b32.xlu0 %v181, 1
        %v447 = vpop.permute.xlu0 %446
        %v456 = vsub.f32 %v174, %v433
        %v457 = vsub.f32 %v175, %v435
        %v458 = vsub.f32 %v176, %v437
        %v459 = vsub.f32 %v177, %v439
        %v460 = vsub.f32 %v178, %v441
        %v461 = vsub.f32 %v179, %v443
        %v462 = vsub.f32 %v180, %v445
        %v463 = vsub.f32 %v181, %v447
        %v464 = vmul.f32 %v456, %v456
        %v465 = vmul.f32 %v457, %v457
        %v466 = vmul.f32 %v458, %v458
        %v467 = vmul.f32 %v459, %v459
        %v468 = vmul.f32 %v460, %v460
        %v469 = vmul.f32 %v461, %v461
        %v470 = vmul.f32 %v462, %v462
        %v471 = vmul.f32 %v463, %v463
        %vm472 = vcmask 130056
        %v473 = vsel %vm472, %v464, 0.0
        %v474 = vsel %vm472, %v465, 0.0
        %v475 = vadd.f32 %v473, %v474
        %v476 = vsel %vm472, %v466, 0.0
        %v477 = vadd.f32 %v475, %v476
        %v478 = vsel %vm472, %v467, 0.0
        %v479 = vadd.f32 %v477, %v478
        %v480 = vsel %vm472, %v468, 0.0
        %v481 = vadd.f32 %v479, %v480
        %v482 = vsel %vm472, %v469, 0.0
        %v483 = vadd.f32 %v481, %v482
        %v484 = vsel %vm472, %v470, 0.0
        %v485 = vadd.f32 %v483, %v484
        %v486 = vsel %vm472, %v471, 0.0
        %v487 = vadd.f32 %v485, %v486
        %v488 = vrot.slane %v487, 4
        %v489 = vadd.f32 %v487, %v488
        %v490 = vrot.slane %v489, 2
        %v491 = vadd.f32 %v489, %v490
        %v492 = vrot.slane %v491, 1
        %v493 = vadd.f32 %v491, %v492
        %vm494 = vcmp.eq.s32.totalorder %v232, 0
        %v495 = vsel %vm494, %v431, 0.0
        %496 = vst.msk [vmem:[%s169] sm:$0xff] %vm409, %v495
        %v497 = vsel %vm494, %v493, 0.0
        %499 = vrot.lane.b32.xlu0 %v497, 127
        %v500 = vpop.permute.xlu0 %499
        %vm502 = vcmask 121856
        %503 = vst.msk [vmem:[%s173] sm:$0xff] %vm502, %v500
        %p504 = scmp.lt.s32.totalorder %s17, 1
        %s505 = scalar_select %p504, %s17, 1
        %s506 = smul.addr %s505, 8
        %s507 = scalar_lea.vmem %s1, %s506
        %p508 = scmp.lt.s32.totalorder %s17, 1
        %s509 = scalar_select %p508, %s17, 1
        %s510 = smul.addr %s509, 8
        %s511 = scalar_lea.vmem %s2, %s510
        // Predicated region
        $region29: #{tv_loss.1} parent=23 // pred_check
          %p512 = pneg %p61
        $region30: #{tv_loss.1} parent=23 // pred_check_branch
          %514 = sbr.rel (%p512) target = $region32
        $region31: #{tv_loss.1} parent=23 // pred_region
          _
        $region32: #{tv_loss.1} parent=23 // pred_fallthru
          _
        // Predicated region
        $region33: #{tv_loss.1} parent=23 // pred_check
          %p515 = pneg %p87
        $region34: #{tv_loss.1} parent=23 // pred_check_branch
          %517 = sbr.rel (%p515) target = $region36
        $region35: #{tv_loss.1} parent=23 // pred_region
          _
        $region36: #{tv_loss.1} parent=23 // pred_fallthru
          _
      $region24: #{tv_loss.1} parent=5 // pred_fallthru
        _
      %p518 = scmp.le.s32.totalorder 2, %s12
      // Predicated region
      $region37: #{tv_loss.1} parent=5 // pred_check
        %p519 = pneg %p518
      $region38: #{tv_loss.1} parent=5 // pred_check_branch
        %521 = sbr.rel (%p519) target = $region40
      $region39: #{tv_loss.1} parent=5 // pred_region
        %s522 = ssub.s32 %s12, 2
        // Predicated region
        $region41: #{tv_loss.1} parent=39 // pred_check
          %p523 = pneg %p67
        $region42: #{tv_loss.1} parent=39 // pred_check_branch
          %525 = sbr.rel (%p523) target = $region44
        $region43: #{tv_loss.1} parent=39 // pred_region
          %p526 = scmp.lt.s32.totalorder %s18, 1
          %s527 = scalar_select %p526, %s18, 1
          %s528 = smul.addr %s527, 8
          %s529 = scalar_lea.vmem %s1, %s528
        $region44: #{tv_loss.1} parent=39 // pred_fallthru
          _
        // Predicated region
        $region45: #{tv_loss.1} parent=39 // pred_check
          %p530 = pneg %p93
        $region46: #{tv_loss.1} parent=39 // pred_check_branch
          %532 = sbr.rel (%p530) target = $region48
        $region47: #{tv_loss.1} parent=39 // pred_region
          %p533 = scmp.lt.s32.totalorder %s18, 1
          %s534 = scalar_select %p533, %s18, 1
          %s535 = smul.addr %s534, 8
          %s536 = scalar_lea.vmem %s2, %s535
        $region48: #{tv_loss.1} parent=39 // pred_fallthru
          _
      $region40: #{tv_loss.1} parent=5 // pred_fallthru
        _
    $region6: #{tv_loss.1} parent=1 // loop_footer
      %s16 = sadd.s32 1, %s12
    $region7: #{tv_loss.1} parent=1 // loop_footer_branch
      %11 = sbr.rel target = $region3
    $region8: #{tv_loss.1} parent=1 // loop_exit
      _
    %537 = vsyncpa [#allocation3], 1
    %s538 = scalar_lea.sflag [#allocation3], 1
    %539 = vsyncpa %s538, 1

</llo_original>
